<compile_context>
chip_gen: v6e
topology: v6e:2x2x1
jax: 0.10.0
libtpu: 0.0.40
codegen_flags: <defaults>
</compile_context>

<pallas_src>
import math
import functools

import jax
import jax.numpy as jnp
from jax import lax
from jax.experimental import pallas as pl
from jax.experimental.pallas import tpu as pltpu


# ---------------------------------------------------------------------------
# helpers
# ---------------------------------------------------------------------------
def _matmul_nt(a, b):
    """a @ b.T contracting the last dim of both (no transpose materialized)."""
    return lax.dot_general(a, b, (((1,), (1,)), ((), ())),
                           preferred_element_type=jnp.float32)


def _softmax_last(s):
    """Row softmax with the divide on the EUP (approx reciprocal)."""
    mx = jnp.max(s, axis=-1, keepdims=True)
    e = jnp.exp(s - mx)
    return e * pl.reciprocal(jnp.sum(e, axis=-1, keepdims=True), approx=True)


def _seq_tile(n, cap=512):
    """Largest divisor of n that is <= cap and a multiple of 8 (or n itself)."""
    if n <= cap:
        return n
    for t in range(cap, 0, -1):
        if n % t == 0 and t % 8 == 0:
            return t
    return n


# ---------------------------------------------------------------------------
# kernels
# ---------------------------------------------------------------------------
def _qkv_proj_kernel(x_ref, w_ref, o_ref):
    # (tile_n, dim) @ (dim, 3*inner) -> lane-dense bf16 qkv rows.
    o_ref[0] = jnp.dot(x_ref[0], w_ref[...],
                       preferred_element_type=jnp.float32).astype(o_ref.dtype)


def _landmark_kernel(xp_ref, wqk_ref, qlkl_ref, attn2_ref, *,
                     heads, dh, inner, m, scale, inv_l):
    """Per batch: q/k landmarks from group-pooled x, sim2 softmax per head.

    Landmark pooling commutes with the bias-free to_qkv projection, so the
    whole landmark path runs on the tiny (m, dim) pooled input."""
    xp = xp_ref[0]                                                 # (m, dim)
    qk = jnp.dot(xp, wqk_ref[...], preferred_element_type=jnp.float32)
    q_l = qk[:, :inner] * (scale * inv_l)      # == pooled(q * scale) / l_dim
    k_l = qk[:, inner:] * inv_l                # == pooled(k) / l_dim
    qlkl_ref[0] = jnp.concatenate([q_l, k_l], axis=-1)
    for hh in range(heads):
        lo = hh * dh
        s2 = _matmul_nt(q_l[:, lo:lo + dh], k_l[:, lo:lo + dh])    # (m, m)
        attn2_ref[0, hh] = jax.nn.softmax(s2, axis=-1)


def _fused_attn_kernel(denom_ref, convw_ref, qlkl_ref, attn2_ref, qkv_ref,
                       o_ref, *, heads, dh, inner, m, n_pad, scale,
                       pinv_iters, ksize, residual):
    """Per batch: sims, softmax, Moore-Penrose pinv, attention output and the
    residual depthwise conv — attn1/attn3 never leave VMEM, output is written
    lane-dense in 'b n (h d)' layout."""
    qkv = qkv_ref[0]                    # (n_pad, 3*inner) bf16
    qlkl = qlkl_ref[0]                  # (m, 2*inner) f32 (scaled / divided)

    # identity reused by every head / iteration (built once per batch step)
    ii = lax.broadcasted_iota(jnp.int32, (m, m), 0)
    jj = lax.broadcasted_iota(jnp.int32, (m, m), 1)
    eye = (ii == jj).astype(jnp.float32)
    inv_denom = 1.0 / denom_ref[0]      # global Moore-Penrose normaliser

    head_outs = []
    for hh in range(heads):
        lo = hh * dh
        q = qkv[:, lo:lo + dh]                                   # (n_pad, dh)
        k = qkv[:, inner + lo:inner + lo + dh]
        v = qkv[:, 2 * inner + lo:2 * inner + lo + dh]
        q_l = qlkl[:, lo:lo + dh].astype(jnp.bfloat16)           # (m, dh)
        k_l = qlkl[:, inner + lo:inner + lo + dh].astype(jnp.bfloat16)

        # sims on the MXU in bf16 with f32 accumulation (scale folded after).
        sim1 = _matmul_nt(q, k_l) * scale        # (n_pad, m)
        sim3 = _matmul_nt(q_l, k)                # (m, n_pad)
        attn1 = _softmax_last(sim1)
        attn3 = _softmax_last(sim3)

        # Moore-Penrose iterative pseudo-inverse of attn2 (kept in f32).
        a2 = attn2_ref[0, hh]                    # (m, m)
        z = a2.T * inv_denom
        for _ in range(pinv_iters):
            az = jnp.dot(a2, z, preferred_element_type=jnp.float32)
            t = 7.0 * eye - az
            t = 15.0 * eye - jnp.dot(az, t, preferred_element_type=jnp.float32)
            t = 13.0 * eye - jnp.dot(az, t, preferred_element_type=jnp.float32)
            z = 0.25 * jnp.dot(z, t, preferred_element_type=jnp.float32)

        # out_h = (attn1 @ pinv(attn2)) @ (attn3 @ v)  (same association as torch)
        left = jnp.dot(attn1.astype(jnp.bfloat16), z.astype(jnp.bfloat16),
                       preferred_element_type=jnp.float32)        # (n_pad, m)
        right = jnp.dot(attn3.astype(jnp.bfloat16), v,
                        preferred_element_type=jnp.float32)       # (m, dh)
        head_outs.append(jnp.dot(left.astype(jnp.bfloat16),
                                 right.astype(jnp.bfloat16),
                                 preferred_element_type=jnp.float32))

    out = jnp.concatenate(head_outs, axis=-1)                     # (n_pad, inner)

    if residual:
        # depthwise residual conv along n for ALL heads at once (lane-dense).
        # TODO(synk): the shifted sublane slices could become pltpu.roll (XLU)
        # shifts + masks to avoid the K small in-VMEM slab copies.
        pad = ksize // 2
        v_all = qkv[:, 2 * inner:]                                # (n_pad, inner)
        zrows = jnp.zeros((pad, inner), v_all.dtype)
        vpad = jnp.concatenate([zrows, v_all, zrows], axis=0)
        conv = jnp.zeros((n_pad, inner), jnp.float32)
        for kk in range(ksize):
            conv = conv + vpad[kk:kk + n_pad, :] * convw_ref[kk:kk + 1, :]
        out = out + conv

    o_ref[0] = out


def _out_proj_kernel(y_ref, w_ref, b_ref, o_ref):
    o_ref[0] = (jnp.dot(y_ref[0], w_ref[...], preferred_element_type=jnp.float32)
                + b_ref[...])


# ---------------------------------------------------------------------------
# wrapper
# ---------------------------------------------------------------------------
def nystrom_attention(x, params, *, heads, dim_head, num_landmarks,
                      pinv_iterations, residual, residual_conv_kernel):
    # TODO(synk): mask handling, return_attn and Dropout(p>0) are not
    # implemented (reference forward reproduced for mask=None, eval mode).
    b, n, dim = x.shape
    h, dh, m = heads, dim_head, num_landmarks
    inner = h * dh
    scale = dh ** -0.5
    ksize = residual_conv_kernel

    # front zero-pad so n_pad = m * l_dim (cheapest tensor in the pipeline)
    remainder = n % m
    padding = (m - remainder) if remainder > 0 else 0
    if padding:
        x = jnp.pad(x, ((0, 0), (padding, 0), (0, 0)))
    n_pad = x.shape[1]
    l_dim = math.ceil(n / m)                  # n_pad == m * l_dim

    tile_n = _seq_tile(n_pad)

    # ---- 1) to_qkv projection, tiled over (batch, seq); qkv stored bf16 -----
    qkv = pl.pallas_call(
        _qkv_proj_kernel,
        out_shape=jax.ShapeDtypeStruct((b, n_pad, 3 * inner), jnp.bfloat16),
        grid_spec=pltpu.PrefetchScalarGridSpec(
            num_scalar_prefetch=0,
            grid=(b, n_pad // tile_n),
            in_specs=[
                pl.BlockSpec((1, tile_n, dim), lambda i, j: (i, j, 0)),
                pl.BlockSpec((dim, 3 * inner), lambda i, j: (0, 0)),
            ],
            out_specs=pl.BlockSpec((1, tile_n, 3 * inner), lambda i, j: (i, j, 0)),
        ),
        compiler_params=pltpu.CompilerParams(
            dimension_semantics=("parallel", "parallel")),
    )(x, params["w_qkv"])

    # ---- 2) landmarks + attn2 from group-pooled x (tiny tensors) ------------
    x_pool = x.reshape(b, m, l_dim, dim).sum(axis=2)              # (b, m, dim)
    w_qk = params["w_qkv"][:, :2 * inner]

    landmark_kernel = functools.partial(
        _landmark_kernel, heads=h, dh=dh, inner=inner, m=m,
        scale=scale, inv_l=1.0 / float(l_dim))
    qlkl, attn2 = pl.pallas_call(
        landmark_kernel,
        out_shape=(jax.ShapeDtypeStruct((b, m, 2 * inner), jnp.float32),
                   jax.ShapeDtypeStruct((b, h, m, m), jnp.float32)),
        grid_spec=pltpu.PrefetchScalarGridSpec(
            num_scalar_prefetch=0,
            grid=(b,),
            in_specs=[
                pl.BlockSpec((1, m, dim), lambda i: (i, 0, 0)),
                pl.BlockSpec((dim, 2 * inner), lambda i: (0, 0)),
            ],
            out_specs=(
                pl.BlockSpec((1, m, 2 * inner), lambda i: (i, 0, 0)),
                pl.BlockSpec((1, h, m, m), lambda i: (i, 0, 0, 0)),
            ),
        ),
        compiler_params=pltpu.CompilerParams(dimension_semantics=("parallel",)),
    )(x_pool, w_qk)

    # global Moore-Penrose normaliser (matches PyTorch's global max over b, h)
    abs_a2 = jnp.abs(attn2)
    denom = (jnp.max(abs_a2.sum(-1)) * jnp.max(abs_a2.sum(-2)))
    denom = denom.reshape(1).astype(jnp.float32)

    # per-lane expanded depthwise conv weights: (K, inner), column c -> head c//dh
    w_conv = jnp.repeat(params["w_res_conv"].T, dh, axis=1).astype(jnp.float32)

    # ---- 3) fused sims -> softmax -> pinv -> attention -> residual conv -----
    fused_kernel = functools.partial(
        _fused_attn_kernel, heads=h, dh=dh, inner=inner, m=m, n_pad=n_pad,
        scale=scale, pinv_iters=pinv_iterations, ksize=ksize, residual=residual)
    y = pl.pallas_call(
        fused_kernel,
        out_shape=jax.ShapeDtypeStruct((b, n_pad, inner), jnp.float32),
        grid_spec=pltpu.PrefetchScalarGridSpec(
            num_scalar_prefetch=0,
            grid=(b,),
            in_specs=[
                pl.BlockSpec(memory_space=pltpu.MemorySpace.SMEM),   # denom (1,)
                pl.BlockSpec((ksize, inner), lambda i: (0, 0)),      # conv weights
                pl.BlockSpec((1, m, 2 * inner), lambda i: (i, 0, 0)),
                pl.BlockSpec((1, h, m, m), lambda i: (i, 0, 0, 0)),
                pl.BlockSpec((1, n_pad, 3 * inner), lambda i: (i, 0, 0)),
            ],
            out_specs=pl.BlockSpec((1, n_pad, inner), lambda i: (i, 0, 0)),
        ),
        compiler_params=pltpu.CompilerParams(dimension_semantics=("parallel",)),
    )(denom, w_conv, qlkl, attn2, qkv)

    # ---- 4) to_out: Linear(inner, dim) + bias; Dropout(p=0) is identity -----
    out = pl.pallas_call(
        _out_proj_kernel,
        out_shape=jax.ShapeDtypeStruct((b, n_pad, dim), jnp.float32),
        grid_spec=pltpu.PrefetchScalarGridSpec(
            num_scalar_prefetch=0,
            grid=(b, n_pad // tile_n),
            in_specs=[
                pl.BlockSpec((1, tile_n, inner), lambda i, j: (i, j, 0)),
                pl.BlockSpec((inner, dim), lambda i, j: (0, 0)),
                pl.BlockSpec((1, dim), lambda i, j: (0, 0)),
            ],
            out_specs=pl.BlockSpec((1, tile_n, dim), lambda i, j: (i, j, 0)),
        ),
        compiler_params=pltpu.CompilerParams(
            dimension_semantics=("parallel", "parallel")),
    )(y, params["w_out"], params["b_out"])

    # drop the front-padded rows (smallest tensor in the pipeline)
    return out[:, padding:] if padding else out


# ---------------------------------------------------------------------------
# demo
# ---------------------------------------------------------------------------
if __name__ == "__main__":
    dim = 32
    heads = 4
    dim_head = 8
    num_landmarks = 8
    pinv_iterations = 6
    residual = True
    residual_conv_kernel = 5
    inner = heads * dim_head

    batch, seq = 2, 14           # seq % num_landmarks != 0 -> exercises padding

    key = jax.random.PRNGKey(0)
    k1, k2, k3, k4, k5 = jax.random.split(key, 5)
    params = {
        # to_qkv weight, stored pre-transposed: (dim, 3*inner)
        "w_qkv": 0.05 * jax.random.normal(k1, (dim, 3 * inner), jnp.float32),
        # to_out Linear weight (pre-transposed) and bias
        "w_out": 0.05 * jax.random.normal(k2, (inner, dim), jnp.float32),
        "b_out": 0.05 * jax.random.normal(k3, (1, dim), jnp.float32),
        # res_conv: Conv2d(heads, heads, (K,1), groups=heads, bias=False)
        # -> PyTorch shape (heads, 1, K, 1), stored squeezed as (heads, K)
        "w_res_conv": 0.1 * jax.random.normal(
            k4, (heads, residual_conv_kernel), jnp.float32),
    }

    x = jax.random.normal(k5, (batch, seq, dim), jnp.float32)

    out = nystrom_attention(
        x, params,
        heads=heads, dim_head=dim_head, num_landmarks=num_landmarks,
        pinv_iterations=pinv_iterations, residual=residual,
        residual_conv_kernel=residual_conv_kernel)
    out = jax.block_until_ready(out)

    assert out.shape == (batch, seq, dim), out.shape
    assert bool(jnp.all(jnp.isfinite(out)))
    print("KERNEL_OK")
</pallas_src>

<mosaic_0001>
module attributes {stable_mosaic.version = 11 : i64} {
  func.func @_qkv_proj_kernel(%arg0: i32, %arg1: i32, %arg2: memref<1x16x32xf32, #tpu.memory_space<vmem>>, %arg3: memref<32x96xf32, #tpu.memory_space<vmem>>, %arg4: memref<1x16x96xbf16, #tpu.memory_space<vmem>>) attributes {dimension_semantics = [#tpu.dimension_semantics<parallel>, #tpu.dimension_semantics<parallel>], iteration_bounds = array<i64: 2, 1>, scalar_prefetch = 0 : i64, scratch_operands = 0 : i64, tpu.core_type = #tpu.core_type<tc>, window_params = [{transform_indices = @transform_0, window_bounds = array<i64: 1, 16, 32>}, {pipeline_mode = #tpu.pipeline_mode<synchronous>, transform_indices = @transform_1, window_bounds = array<i64: 32, 96>}, {transform_indices = @transform_2, window_bounds = array<i64: 1, 16, 96>}]} {
    %c0 = arith.constant 0 : index
    %c0_0 = arith.constant 0 : index
    %c0_1 = arith.constant 0 : index
    %0 = vector.load %arg2[%c0, %c0_0, %c0_1] : memref<1x16x32xf32, #tpu.memory_space<vmem>>, vector<1x16x32xf32>
    %1 = vector.shape_cast %0 : vector<1x16x32xf32> to vector<16x32xf32>
    %c0_2 = arith.constant 0 : index
    %c0_3 = arith.constant 0 : index
    %2 = vector.load %arg3[%c0_2, %c0_3] : memref<32x96xf32, #tpu.memory_space<vmem>>, vector<32x96xf32>
    %cst = arith.constant dense<0.000000e+00> : vector<16x96xf32>
    %3 = tpu.matmul %1, %2, %cst {dimension_numbers = #tpu.dot_dimension_numbers<[1], [0], [0], [1], [0, 0, 1, 1], [], []>} : vector<16x32xf32>, vector<32x96xf32>, vector<16x96xf32> -> vector<16x96xf32>
    %4 = arith.truncf %3 : vector<16x96xf32> to vector<16x96xbf16>
    %c0_4 = arith.constant 0 : index
    %c0_5 = arith.constant 0 : index
    %c0_6 = arith.constant 0 : index
    %5 = vector.load %arg4[%c0_4, %c0_5, %c0_6] : memref<1x16x96xbf16, #tpu.memory_space<vmem>>, vector<1x16x96xbf16>
    %6 = vector.shape_cast %5 : vector<1x16x96xbf16> to vector<16x96xbf16>
    %7 = vector.shape_cast %4 : vector<16x96xbf16> to vector<1x16x96xbf16>
    tpu.vector_store %arg4[%c0_4, %c0_5, %c0_6], %7 {strides = array<i32>} : memref<1x16x96xbf16, #tpu.memory_space<vmem>>, vector<1x16x96xbf16>,
    return
  }
  func.func @transform_0(%arg0: i32, %arg1: i32) -> (i32, i32, i32) {
    %c0_i32 = arith.constant 0 : i32
    %c0_i32_0 = arith.constant 0 : i32
    return %arg0, %arg1, %c0_i32 : i32, i32, i32
  }
  func.func @transform_1(%arg0: i32, %arg1: i32) -> (i32, i32) {
    %c0_i32 = arith.constant 0 : i32
    %c0_i32_0 = arith.constant 0 : i32
    %c0_i32_1 = arith.constant 0 : i32
    return %c0_i32, %c0_i32_0 : i32, i32
  }
  func.func @transform_2(%arg0: i32, %arg1: i32) -> (i32, i32, i32) {
    %c0_i32 = arith.constant 0 : i32
    %c0_i32_0 = arith.constant 0 : i32
    return %arg0, %arg1, %c0_i32 : i32, i32, i32
  }
}

</mosaic_0001>

<llo_original>
// kernel: tpu_custom_call.1
$region0: #{tpu_custom_call.1}
  #allocation0 [shape = 'u32[]', space=smem, size = 0x4, offset = 0x4, fixed_abs, tag = 'smem constant byte address 0x4 - core index']
  #allocation1 [shape = 'u32[144,128]{1,0:T(1,128)}', space=vmem, size = 0x12000, scoped, tag = 'internal scratch']
  %s0 = inlined_call_operand.hbm [shape: f32[2,16,32], index: 0, kind: input, shape index: {}]
  %s1 = inlined_call_operand.hbm [shape: f32[32,96], index: 1, kind: input, shape index: {}]
  %s2 = inlined_call_operand.hbm [shape: bf16[2,16,96], index: 2, kind: output, shape index: {}]
  %s3 = sld [smem:[#allocation0]]
  $region49: #{tpu_custom_call.1} parent=0
    _
  %s5 = ssub.s32 1, %s3
  %s6 = scalar_select 0, %s5, %s3
  $region1: #{tpu_custom_call.1} parent=0
    #allocation2 [shape = 'u8[16384]{0}', space=vmem, size = 0x4000, scoped, tag = 'input window, operand 0']
    #allocation3 [shape = 's32[2]{0}', space=sflag, size = 0x8, scoped, tag = 'scoped memory for tpu_custom_call.1']
    #allocation4 [shape = 's32[2]{0}', space=sflag, size = 0x8, scoped, tag = 'scoped memory for tpu_custom_call.1']
    #allocation5 [shape = 'u8[16384]{0}', space=vmem, size = 0x4000, scoped, tag = 'input window, operand 1, single buffered']
    #allocation6 [shape = 's32[1]{0}', space=sflag, size = 0x4, scoped, tag = 'scoped memory for tpu_custom_call.1']
    #allocation7 [shape = 'u8[8192]{0}', space=vmem, size = 0x2000, scoped, tag = 'output window, operand 0']
    %7 = vsyncpa [#allocation3], 0
    %s8 = scalar_lea.sflag [#allocation3], 1
    %9 = vsyncpa %s8, 0
    %10 = vsyncpa [#allocation6], 0
    %11 = vsyncpa [#allocation4], 0
    %s12 = scalar_lea.sflag [#allocation4], 1
    %13 = vsyncpa %s12, 0
    loop: start=0, step=1, limit=4
    $region2: #{tpu_custom_call.1} parent=1 // loop_pre_header
      _
    $region3: #{tpu_custom_call.1} parent=1 // loop_header
      %s15 = sphi 0, %s19
      %p16 = scmp.ge.s32.totalorder %s15, 4
      %s22 = sphi 0, %s34
      %s23 = sphi 0, %s30
      %s24 = sphi 0, %s22
      %s25 = sphi 0, %s23
      %s26 = sphi 0, %s24
      %s27 = sphi 0, %s25
      %s39 = sphi 0, %s41
      %s42 = sphi 0, %s39
      %s43 = sphi 0, %s42
      %s59 = sphi 0, %s43
      %s63 = sphi 0, %s63
      %s65 = sphi 0, %s63
      %s66 = sphi 0, %s65
      %s80 = sphi 0, %s66
      %s88 = sphi 0, %s90
      %s91 = sphi 0, %s88
      %s92 = sphi 0, %s91
      %s108 = sphi 0, %s92
    $region4: #{tpu_custom_call.1} parent=1 // loop_header_branch
      %18 = sbr.rel (%p16) target = $region8
    $region5: #{tpu_custom_call.1} parent=1 // loop_body
      %s20 = ssub.s32 %s15, 1
      %s21 = ssub.s32 %s15, 2
      %s28 = sadd.s32 1, %s23
      %p29 = scmp.ge.s32.totalorder %s28, 1
      %s30 = scalar_select %p29, 0, %s28
      %s31 = sadd.s32 1, %s22
      %s32 = scalar_select %p29, %s31, %s22
      %p33 = scmp.ge.s32.totalorder %s32, 2
      %s34 = scalar_select %p33, 0, %s32
      %s35 = ssub.s32 %s22, %s34
      %s36 = ssub.s32 %s23, %s30
      %s37 = sor.u32 %s35, %s36
      %p38 = scmp.eq.s32.totalorder %s37, 0
      %s40 = sadd.s32 %s39, 1
      %s41 = scalar_select %p38, %s39, %s40
      %p44 = pneg %p38
      %p45 = scmp.eq.s32.totalorder %s15, 1
      %p46 = por %p44, %p45
      %p47 = scmp.ne.s32.totalorder %s39, %s42
      %p48 = scmp.eq.s32.totalorder %s15, 0
      %p49 = por %p47, %p48
      %p50 = scmp.ne.s32.totalorder %s39, %s42
      %p51 = scmp.eq.s32.totalorder %s20, 1
      %p52 = por %p50, %p51
      %p53 = scmp.ne.s32.totalorder %s42, %s43
      %p54 = scmp.eq.s32.totalorder %s20, 0
      %p55 = por %p53, %p54
      %p56 = scmp.ne.s32.totalorder %s42, %s43
      %p57 = scmp.eq.s32.totalorder %s21, 1
      %p58 = por %p56, %p57
      %p60 = scmp.ne.s32.totalorder %s43, %s59
      %p61 = scmp.eq.s32.totalorder %s21, 0
      %p62 = por %p60, %p61
      %s64 = sadd.s32 %s63, 1
      %p67 = scmp.eq.s32.totalorder %s15, 1
      %p68 = scmp.ne.s32.totalorder %s63, %s65
      %p69 = scmp.eq.s32.totalorder %s15, 0
      %p70 = por %p68, %p69
      %p71 = scmp.ne.s32.totalorder %s63, %s65
      %p72 = scmp.eq.s32.totalorder %s20, 1
      %p73 = por %p71, %p72
      %p74 = scmp.ne.s32.totalorder %s65, %s66
      %p75 = scmp.eq.s32.totalorder %s20, 0
      %p76 = por %p74, %p75
      %p77 = scmp.ne.s32.totalorder %s65, %s66
      %p78 = scmp.eq.s32.totalorder %s21, 1
      %p79 = por %p77, %p78
      %p81 = scmp.ne.s32.totalorder %s66, %s80
      %p82 = scmp.eq.s32.totalorder %s21, 0
      %p83 = por %p81, %p82
      %s84 = ssub.s32 %s22, %s34
      %s85 = ssub.s32 %s23, %s30
      %s86 = sor.u32 %s84, %s85
      %p87 = scmp.eq.s32.totalorder %s86, 0
      %s89 = sadd.s32 %s88, 1
      %s90 = scalar_select %p87, %s88, %s89
      %p93 = pneg %p87
      %p94 = scmp.eq.s32.totalorder %s15, 1
      %p95 = por %p93, %p94
      %p96 = scmp.ne.s32.totalorder %s88, %s91
      %p97 = scmp.eq.s32.totalorder %s15, 0
      %p98 = por %p96, %p97
      %p99 = scmp.ne.s32.totalorder %s88, %s91
      %p100 = scmp.eq.s32.totalorder %s20, 1
      %p101 = por %p99, %p100
      %p102 = scmp.ne.s32.totalorder %s91, %s92
      %p103 = scmp.eq.s32.totalorder %s20, 0
      %p104 = por %p102, %p103
      %p105 = scmp.ne.s32.totalorder %s91, %s92
      %p106 = scmp.eq.s32.totalorder %s21, 1
      %p107 = por %p105, %p106
      %p109 = scmp.ne.s32.totalorder %s92, %s108
      %p110 = scmp.eq.s32.totalorder %s21, 0
      %p111 = por %p109, %p110
      %p112 = scmp.le.s32.totalorder 1, %s15
      %p113 = scmp.lt.s32.totalorder %s15, 3
      %p114 = pnand %p112, %p113
      %p115 = pneg %p114
      // Predicated region
      $region9: #{tpu_custom_call.1} parent=5 // pred_check
        _
      $region10: #{tpu_custom_call.1} parent=5 // pred_check_branch
        %117 = sbr.rel (%p114) target = $region12
      $region11: #{tpu_custom_call.1} parent=5 // pred_region
        %s118 = ssub.s32 %s15, 1
        // Predicated region
        $region13: #{tpu_custom_call.1} parent=11 // pred_check
          %p119 = pneg %p76
        $region14: #{tpu_custom_call.1} parent=11 // pred_check_branch
          %121 = sbr.rel (%p119) target = $region16
        $region15: #{tpu_custom_call.1} parent=11 // pred_region
          %s123 = ssub.s32 512, 512
          %124 = vsyncadd [#allocation6], %s123
          %s125 = sshll.u32 [#allocation5], 4
          %s126 = int_to_ptr.vmem [resolvable:$true] %s125
          %131 = dma.hbm_to_vmem [thread:$0]  %s1, 512, %s126, [#allocation6], 128, 128, 8
        $region16: #{tpu_custom_call.1} parent=11 // pred_fallthru
          _
      $region12: #{tpu_custom_call.1} parent=5 // pred_fallthru
        _
      %p132 = scmp.lt.s32.totalorder %s15, 2
      // Predicated region
      $region17: #{tpu_custom_call.1} parent=5 // pred_check
        %p133 = pneg %p132
      $region18: #{tpu_custom_call.1} parent=5 // pred_check_branch
        %135 = sbr.rel (%p133) target = $region20
      $region19: #{tpu_custom_call.1} parent=5 // pred_region
        // Predicated region
        $region21: #{tpu_custom_call.1} parent=19 // pred_check
          %p136 = pneg %p49
        $region22: #{tpu_custom_call.1} parent=19 // pred_check_branch
          %138 = sbr.rel (%p136) target = $region24
        $region23: #{tpu_custom_call.1} parent=19 // pred_region
          %s139 = sand.u32 %s39, 1
          %s140 = scalar_lea.sflag [#allocation3], %s139
          %s141 = sand.u32 %s39, 1
          %s142 = smul.addr %s141, 16
          %s143 = scalar_lea.vmem [#allocation2], %s142
          %s144 = smul.u32 2, %s23
          %s146 = ssub.s32 256, 256
          %147 = vsyncadd %s140, %s146
          %s148 = smul.addr %s22, 2
          %s149 = sadd.s32 %s144, %s148
          %s150 = smul.addr %s149, 128
          %s151 = scalar_lea.hbm %s0, %s150
          %s152 = sshll.u32 %s143, 4
          %s153 = int_to_ptr.vmem [resolvable:$true] %s152
          %158 = dma.hbm_to_vmem [thread:$0]  %s151, 256, %s153, %s140, 128, 128, 8
        $region24: #{tpu_custom_call.1} parent=19 // pred_fallthru
          _
      $region20: #{tpu_custom_call.1} parent=5 // pred_fallthru
        _
      %p159 = scmp.le.s32.totalorder 1, %s15
      %p160 = scmp.lt.s32.totalorder %s15, 3
      %p161 = pnand %p159, %p160
      %p162 = pneg %p161
      // Predicated region
      $region25: #{tpu_custom_call.1} parent=5 // pred_check
        _
      $region26: #{tpu_custom_call.1} parent=5 // pred_check_branch
        %164 = sbr.rel (%p161) target = $region28
      $region27: #{tpu_custom_call.1} parent=5 // pred_region
        %s165 = ssub.s32 %s15, 1
        %s166 = sand.u32 %s42, 1
        %s167 = scalar_lea.sflag [#allocation3], %s166
        %s168 = sand.u32 %s42, 1
        %s169 = smul.addr %s168, 16
        %s170 = scalar_lea.vmem [#allocation2], %s169
        // Predicated region
        $region29: #{tpu_custom_call.1} parent=27 // pred_check
          %p171 = pneg %p55
        $region30: #{tpu_custom_call.1} parent=27 // pred_check_branch
          %173 = sbr.rel (%p171) target = $region32
        $region31: #{tpu_custom_call.1} parent=27 // pred_region
          %174 = dma.done %s167, 256
        $region32: #{tpu_custom_call.1} parent=27 // pred_fallthru
          _
        // Predicated region
        $region33: #{tpu_custom_call.1} parent=27 // pred_check
          %p175 = pneg %p76
        $region34: #{tpu_custom_call.1} parent=27 // pred_check_branch
          %177 = sbr.rel (%p175) target = $region36
        $region35: #{tpu_custom_call.1} parent=27 // pred_region
          %178 = dma.done [#allocation6], 512
        $region36: #{tpu_custom_call.1} parent=27 // pred_fallthru
          _
        %s179 = sand.u32 %s42, 1
        %s180 = scalar_lea.sflag [#allocation3], %s179
        %s181 = sand.u32 %s42, 1
        %s182 = smul.addr %s181, 16
        %s183 = scalar_lea.vmem [#allocation2], %s182
        %p184 = pneg %p55
        %p185 = pneg %p52
        %p186 = pneg %p76
        %p187 = pneg %p73
        %p188 = pneg %p104
        %p189 = pneg %p101
        %s190 = sand.u32 %s91, 1
        %s191 = scalar_lea.sflag [#allocation4], %s190
        %s192 = sand.u32 %s91, 1
        %s193 = smul.addr %s192, 8
        %s194 = scalar_lea.vmem [#allocation7], %s193
        %s195 = smul.u32 2, %s25
        %s196 = smul.u32 2, %s25
        %v197 = vld [vmem:[%s170] sm:$0xff]
        %v198 = vld [vmem:[%s170 + $0x8] sm:$0xff]
        %v199 = vld [vmem:[#allocation5] sm:$0xff]
        %v200 = vld [vmem:[#allocation5 + $0x8] sm:$0xff]
        %v201 = vld [vmem:[#allocation5 + $0x10] sm:$0xff]
        %v202 = vld [vmem:[#allocation5 + $0x18] sm:$0xff]
        %vm203 = vcmask 261120
        %v205 = vsel %vm203, %v197, 0
        %v208 = vsel %vm203, %v198, 0
        %210 = vmatprep.subr.mxu0 0.0
        %211 = vmatpush1.msra.mxu0 0.0
        %212 = vmatprep.subr.mxu0 0.0
        %213 = vmatpush1.msra.mxu0 0.0
        %214 = vmatprep.subr.mxu0 0.0
        %215 = vmatpush1.msra.mxu0 0.0
        %216 = vmatprep.subr.mxu0 0.0
        %217 = vmatpush1.msra.mxu0 0.0
        %218 = vmatprep.subr.mxu0 0.0
        %219 = vmatpush1.msra.mxu0 0.0
        %220 = vmatprep.subr.mxu0 0.0
        %221 = vmatpush1.msra.mxu0 0.0
        %222 = vmatprep.subr.mxu0 0.0
        %223 = vmatpush1.msra.mxu0 0.0
        %224 = vmatprep.subr.mxu0 0.0
        %225 = vmatpush1.msra.mxu0 0.0
        %226 = vmatprep.subr.mxu0 0.0
        %227 = vmatpush1.msra.mxu0 0.0
        %228 = vmatprep.subr.mxu0 0.0
        %229 = vmatpush1.msra.mxu0 0.0
        %230 = vmatprep.subr.mxu0 0.0
        %231 = vmatpush1.msra.mxu0 0.0
        %232 = vmatprep.subr.mxu0 0.0
        %233 = vmatpush1.msra.mxu0 0.0
        %234 = vmatprep.subr.mxu0 0.0
        %235 = vmatpush1.msra.mxu0 %v202
        %236 = vmatprep.subr.mxu0 0.0
        %237 = vmatpush1.msra.mxu0 %v201
        %238 = vmatprep.subr.mxu0 0.0
        %239 = vmatpush1.msra.mxu0 %v200
        %240 = vmatprep.subr.mxu0 0.0
        %241 = vmatpush1.msra.mxu0 %v199
        %242 = vmatprep.subr.mxu0 0.0
        %243 = vmatpush2.msra.mxu0 0.0
        %244 = vmatprep.subr.mxu0 0.0
        %245 = vmatpush2.msra.mxu0 0.0
        %246 = vmatprep.subr.mxu0 0.0
        %247 = vmatpush2.msra.mxu0 0.0
        %248 = vmatprep.subr.mxu0 0.0
        %249 = vmatpush2.msra.mxu0 0.0
        %250 = vmatprep.subr.mxu0 0.0
        %251 = vmatpush2.msra.mxu0 0.0
        %252 = vmatprep.subr.mxu0 0.0
        %253 = vmatpush2.msra.mxu0 0.0
        %254 = vmatprep.subr.mxu0 0.0
        %255 = vmatpush2.msra.mxu0 0.0
        %256 = vmatprep.subr.mxu0 0.0
        %257 = vmatpush2.msra.mxu0 0.0
        %258 = vmatprep.subr.mxu0 0.0
        %259 = vmatpush2.msra.mxu0 0.0
        %260 = vmatprep.subr.mxu0 0.0
        %261 = vmatpush2.msra.mxu0 0.0
        %262 = vmatprep.subr.mxu0 0.0
        %263 = vmatpush2.msra.mxu0 0.0
        %264 = vmatprep.subr.mxu0 0.0
        %265 = vmatpush2.msra.mxu0 0.0
        %266 = vmatprep.subr.mxu0 0.0
        %267 = vmatpush2.msra.mxu0 0.0
        %268 = vmatprep.subr.mxu0 0.0
        %269 = vmatpush2.msra.mxu0 0.0
        %270 = vmatprep.subr.mxu0 0.0
        %271 = vmatpush2.msra.mxu0 0.0
        %272 = vmatprep.subr.mxu0 0.0
        %273 = vmatpush2.msra.mxu0 0.0
        %274 = vmatprep.mubr.f32.mxu0 0.0
        %275 = vmatmul.mubr.f32.gmra.mxu0 %v205
        %v276 = vpop.f32.mrf.mxu0
        %v277 = vadd.f32 0.0, %v276
        %v278 = vpop.f32.mrf.mxu0
        %279 = vmatprep.mubr.f32.mxu0 0.0
        %280 = vmatmul.mubr.f32.gmra.mxu0 %v208
        %v281 = vpop.f32.mrf.mxu0
        %v282 = vadd.f32 0.0, %v281
        %v283 = vpop.f32.mrf.mxu0
        %284 = vdwg.mxu0
        %v285 = vpack.c.bf16 %v282, %v277
        %v287 = vunpack.c.l.b16 %v285
        %v288 = vunpack.c.h.b16 %v285
        %v289 = vpack.c.b16 %v287, %v287
        %v290 = vpack.c.b16 %v288, %v288
        %vm293 = vcmask 781312
        %294 = vst.msk [vmem:[%s194] sm:$0xf] %vm293, %v289
        %295 = vst.msk [vmem:[%s194 + $0x4] sm:$0xf] %vm293, %v290
        %s296 = sand.u32 %s91, 1
        %s297 = scalar_lea.sflag [#allocation4], %s296
        %s298 = sand.u32 %s91, 1
        %s299 = smul.addr %s298, 8
        %s300 = scalar_lea.vmem [#allocation7], %s299
        // Predicated region
        $region37: #{tpu_custom_call.1} parent=27 // pred_check
          %p301 = pneg %p101
        $region38: #{tpu_custom_call.1} parent=27 // pred_check_branch
          %303 = sbr.rel (%p301) target = $region40
        $region39: #{tpu_custom_call.1} parent=27 // pred_region
          %s304 = smul.u32 2, %s25
          %s306 = ssub.s32 128, 128
          %307 = vsyncadd %s297, %s306
          %s308 = smul.addr %s24, 2
          %s309 = sadd.s32 %s304, %s308
          %s310 = smul.addr %s309, 64
          %s311 = scalar_lea.hbm %s2, %s310
          %s312 = sshll.u32 %s300, 4
          %s313 = int_to_ptr.vmem [resolvable:$true] %s312
          %318 = dma.vmem_to_hbm [thread:$0]  %s313, 128, %s311, %s297, 64, 64, 4
        $region40: #{tpu_custom_call.1} parent=27 // pred_fallthru
          _
      $region28: #{tpu_custom_call.1} parent=5 // pred_fallthru
        _
      %p319 = scmp.le.s32.totalorder 2, %s15
      // Predicated region
      $region41: #{tpu_custom_call.1} parent=5 // pred_check
        %p320 = pneg %p319
      $region42: #{tpu_custom_call.1} parent=5 // pred_check_branch
        %322 = sbr.rel (%p320) target = $region44
      $region43: #{tpu_custom_call.1} parent=5 // pred_region
        %s323 = ssub.s32 %s15, 2
        // Predicated region
        $region45: #{tpu_custom_call.1} parent=43 // pred_check
          %p324 = pneg %p107
        $region46: #{tpu_custom_call.1} parent=43 // pred_check_branch
          %326 = sbr.rel (%p324) target = $region48
        $region47: #{tpu_custom_call.1} parent=43 // pred_region
          %s327 = sand.u32 %s92, 1
          %s328 = scalar_lea.sflag [#allocation4], %s327
          %s329 = sand.u32 %s92, 1
          %s330 = smul.addr %s329, 8
          %s331 = scalar_lea.vmem [#allocation7], %s330
          %332 = dma.done %s328, 128
        $region48: #{tpu_custom_call.1} parent=43 // pred_fallthru
          _
      $region44: #{tpu_custom_call.1} parent=5 // pred_fallthru
        _
    $region6: #{tpu_custom_call.1} parent=1 // loop_footer
      %s19 = sadd.s32 1, %s15
    $region7: #{tpu_custom_call.1} parent=1 // loop_footer_branch
      %14 = sbr.rel target = $region3
    $region8: #{tpu_custom_call.1} parent=1 // loop_exit
      _
    %333 = vsyncpa [#allocation3], 1
    %s334 = scalar_lea.sflag [#allocation3], 1
    %335 = vsyncpa %s334, 1
    %336 = vsyncpa [#allocation6], 1
    %337 = vsyncpa [#allocation4], 1
    %s338 = scalar_lea.sflag [#allocation4], 1
    %339 = vsyncpa %s338, 1

</llo_original>
